<compile_context>
chip_gen: v7x
topology: tpu7x:2x2x1
jax: 0.10.0
libtpu: 0.0.40
codegen_flags: <defaults>
</compile_context>

<pallas_src>
import math
import jax
import jax.numpy as jnp
from jax.experimental import pallas as pl
from jax.experimental.pallas import tpu as pltpu


def _get_pad(size: int, multiple: int):
    new_size = math.ceil(size / multiple) * multiple
    pad = new_size - size
    left = pad // 2
    return left, pad - left


def _round_up(v: int, m: int) -> int:
    return ((v + m - 1) // m) * m


def _sublane(itemsize: int) -> int:
    # Minimum sublane multiple per dtype width: 8 (f32), 16 (bf16), 32 (int8).
    return max(8, 32 // max(itemsize, 1))


_TINY_PROBLEM_BYTES = 2 << 20   # below this, one grid step (step overhead dominates)
_MIN_GRID_STEPS = 6             # >= 3 steps per TensorCore on v7x megacore


def _vmem_budgets():
    """(physical_vmem, block_budget, scoped_limit) in bytes, per chip generation."""
    phys = None
    try:
        info = pltpu.get_tpu_info()
        phys = getattr(info, "vmem_capacity_bytes", None)
    except Exception:
        phys = None
    if not phys or phys <= 0:
        phys = 64 * 1024 * 1024          # conservative fallback: v7x per-TC VMEM
    budget = phys // 2                   # in + out blocks, double-buffered
    limit = (phys * 3) // 4              # scoped VMEM limit, leaves headroom
    return int(phys), int(budget), int(limit)


# ----------------------------------------------------------------------------- kernels


def _make_hpad_slab_kernel(H, W, Hp, ph0):
    """H-only padding on lane-dense slabs: x (B, H*W) -> o (B, Hp*W), write-once."""
    HW, HpW = H * W, Hp * W
    front = ph0 * W
    tail = HpW - front - HW

    def kernel(x_ref, o_ref):
        B = o_ref.shape[0]
        dt = o_ref.dtype
        if front > 0:
            o_ref[:, 0:front] = jnp.zeros((B, front), dt)
        o_ref[:, front:front + HW] = x_ref[...]
        if tail > 0:
            o_ref[:, front + HW:HpW] = jnp.zeros((B, tail), dt)

    return kernel


def _make_pad3d_kernel(H, W, Hp, Wp, ph0, pw0):
    """General padding on 3D blocks: x (B, H, W) -> o (B, Hp, Wp), write-once.
    Four zero bands + one interior copy (single constant lane shift pw0)."""
    ph1 = Hp - H - ph0
    pw1 = Wp - W - pw0

    def kernel(x_ref, o_ref):
        B = o_ref.shape[0]
        dt = o_ref.dtype
        if ph0 > 0:
            o_ref[:, 0:ph0, :] = jnp.zeros((B, ph0, Wp), dt)
        if ph1 > 0:
            o_ref[:, ph0 + H:Hp, :] = jnp.zeros((B, ph1, Wp), dt)
        if pw0 > 0:
            o_ref[:, ph0:ph0 + H, 0:pw0] = jnp.zeros((B, H, pw0), dt)
        if pw1 > 0:
            o_ref[:, ph0:ph0 + H, pw0 + W:Wp] = jnp.zeros((B, H, pw1), dt)
        o_ref[:, ph0:ph0 + H, pw0:pw0 + W] = x_ref[...]

    return kernel


# ----------------------------------------------------------------------- block sizing


def _choose_planes_2d(nc, in_elems, out_elems, itemsize, budget):
    """Planes/step for the 2D-slab path; (None, per_plane) => use the 3D path."""
    sub = _sublane(itemsize)
    per_plane = 2 * (_round_up(in_elems, 128) + _round_up(out_elems, 128)) * itemsize
    total = nc * per_plane
    if total <= budget and total <= _TINY_PROBLEM_BYTES:
        return nc, per_plane                       # tiny problem: one grid step
    b = budget // max(per_plane, 1)
    if b < sub or nc < sub:
        return None, per_plane                     # 3D path allows B down to 1
    cap = max(sub, ((nc // _MIN_GRID_STEPS) // sub) * sub)
    b = max(sub, (min(b, cap) // sub) * sub)
    return b, per_plane


def _choose_planes_3d(nc, H, W, Hp, Wp, itemsize, budget):
    """Planes/step for the 3D-block path (leading dim: any B >= 1 is legal)."""
    sub = _sublane(itemsize)
    in_plane = _round_up(H, sub) * _round_up(W, 128) * itemsize
    out_plane = _round_up(Hp, sub) * _round_up(Wp, 128) * itemsize
    per_plane = 2 * (in_plane + out_plane)         # double-buffered in + out
    total = nc * per_plane
    if total <= budget and total <= _TINY_PROBLEM_BYTES:
        return nc, per_plane
    b = max(1, budget // max(per_plane, 1))
    b = min(b, max(1, nc // _MIN_GRID_STEPS))
    return max(1, min(b, nc)), per_plane


# --------------------------------------------------------------------------- wrapper


def center_padding(x: jax.Array, multiple: int) -> jax.Array:
    """Pallas implementation of CenterPadding.forward for NCHW input."""
    if x.ndim != 4:
        # TODO(synk): torch module pads every dim past the first two for any ndim;
        # only the NCHW (4D) case is implemented here.
        raise ValueError("center_padding expects NCHW input")
    N, C, H, W = x.shape
    ph0, ph1 = _get_pad(H, multiple)
    pw0, pw1 = _get_pad(W, multiple)
    Hp, Wp = H + ph0 + ph1, W + pw0 + pw1

    if Hp == H and Wp == W:
        return x                                   # identity: no kernel launch

    NC = N * C
    itemsize = x.dtype.itemsize
    phys, budget, limit = _vmem_budgets()

    use_slab = (Wp == W)                           # H-only padding -> lane-dense slab
    B = None
    if use_slab:
        B, per_plane = _choose_planes_2d(NC, H * W, Hp * W, itemsize, budget)
        use_slab = B is not None

    if use_slab:
        kernel = _make_hpad_slab_kernel(H, W, Hp, ph0)
        x_in = x.reshape(NC, H * W)                # free reshape (contiguous)
        in_spec = pl.BlockSpec((B, H * W), lambda i: (i, 0))
        out_spec = pl.BlockSpec((B, Hp * W), lambda i: (i, 0))
        out_shape = jax.ShapeDtypeStruct((NC, Hp * W), x.dtype)
    else:
        B, per_plane = _choose_planes_3d(NC, H, W, Hp, Wp, itemsize, budget)
        kernel = _make_pad3d_kernel(H, W, Hp, Wp, ph0, pw0)
        x_in = x.reshape(NC, H, W)                 # free reshape (contiguous)
        in_spec = pl.BlockSpec((B, H, W), lambda i: (i, 0, 0))
        out_spec = pl.BlockSpec((B, Hp, Wp), lambda i: (i, 0, 0))
        out_shape = jax.ShapeDtypeStruct((NC, Hp, Wp), x.dtype)

    block_bytes = B * per_plane
    # TODO(synk): if a single plane's double-buffered footprint exceeds physical
    # VMEM (multi-hundred-megapixel planes), an H-axis grid split would be needed.
    vmem_limit = int(max(limit, min(phys - (4 << 20), block_bytes + (4 << 20))))

    out = pl.pallas_call(
        kernel,
        out_shape=out_shape,
        grid=(pl.cdiv(NC, B),),
        in_specs=[in_spec],
        out_specs=out_spec,
        compiler_params=pltpu.CompilerParams(
            dimension_semantics=("parallel",),
            vmem_limit_bytes=vmem_limit),
    )(x_in)

    return out.reshape(N, C, Hp, Wp)


def _reference(x: jax.Array, multiple: int) -> jax.Array:
    ph0, ph1 = _get_pad(x.shape[2], multiple)
    pw0, pw1 = _get_pad(x.shape[3], multiple)
    return jnp.pad(x, ((0, 0), (0, 0), (ph0, ph1), (pw0, pw1)))


if __name__ == "__main__":
    key = jax.random.PRNGKey(0)
    k1, k2 = jax.random.split(key)

    # Primary case consistent with the module's forward (NCHW, small shapes).
    x = jax.random.normal(key, (2, 4, 16, 16), dtype=jnp.float32)

    checks = [
        (x, 7),                                                    # H+W pad -> 3D path
        (x, 8),                                                    # identity early-out
        (jax.random.normal(k1, (2, 4, 12, 16), jnp.float32), 8),   # H-only pad -> slab path
        (jax.random.normal(k2, (8, 9, 10, 13), jnp.float32), 7),   # odd shapes, multi-step grid
    ]
    for xi, multiple in checks:
        y = jax.block_until_ready(center_padding(xi, multiple))
        ref = _reference(xi, multiple)
        assert y.shape == ref.shape, (y.shape, ref.shape)
        assert y.dtype == xi.dtype
        assert jnp.array_equal(y, ref), f"mismatch vs reference (multiple={multiple})"

    print("KERNEL_OK")
</pallas_src>

<mosaic_0001>
module attributes {stable_mosaic.version = 11 : i64} {
  func.func @kernel(%arg0: i32, %arg1: memref<8x16x16xf32, #tpu.memory_space<vmem>>, %arg2: memref<8x21x21xf32, #tpu.memory_space<vmem>>) attributes {dimension_semantics = [#tpu.dimension_semantics<parallel>], iteration_bounds = array<i64: 1>, scalar_prefetch = 0 : i64, scratch_operands = 0 : i64, tpu.core_type = #tpu.core_type<tc>, window_params = [{transform_indices = @transform_0, window_bounds = array<i64: 8, 16, 16>}, {transform_indices = @transform_1, window_bounds = array<i64: 8, 21, 21>}]} {
    %cst = arith.constant 0.000000e+00 : f32
    %0 = vector.broadcast %cst : f32 to vector<8x2x21xf32>
    %c0 = arith.constant 0 : index
    %c0_0 = arith.constant 0 : index
    %c0_1 = arith.constant 0 : index
    %1 = vector.load %arg2[%c0, %c0_0, %c0_1] : memref<8x21x21xf32, #tpu.memory_space<vmem>>, vector<8x2x21xf32>
    tpu.vector_store %arg2[%c0, %c0_0, %c0_1], %0 {strides = array<i32>} : memref<8x21x21xf32, #tpu.memory_space<vmem>>, vector<8x2x21xf32>,
    %cst_2 = arith.constant 0.000000e+00 : f32
    %2 = vector.broadcast %cst_2 : f32 to vector<8x3x21xf32>
    %c0_3 = arith.constant 0 : index
    %c18 = arith.constant 18 : index
    %c0_4 = arith.constant 0 : index
    %3 = vector.load %arg2[%c0_3, %c18, %c0_4] : memref<8x21x21xf32, #tpu.memory_space<vmem>>, vector<8x3x21xf32>
    tpu.vector_store %arg2[%c0_3, %c18, %c0_4], %2 {strides = array<i32>} : memref<8x21x21xf32, #tpu.memory_space<vmem>>, vector<8x3x21xf32>,
    %cst_5 = arith.constant 0.000000e+00 : f32
    %4 = vector.broadcast %cst_5 : f32 to vector<8x16x2xf32>
    %c0_6 = arith.constant 0 : index
    %c2 = arith.constant 2 : index
    %c0_7 = arith.constant 0 : index
    %5 = vector.load %arg2[%c0_6, %c2, %c0_7] : memref<8x21x21xf32, #tpu.memory_space<vmem>>, vector<8x16x2xf32>
    tpu.vector_store %arg2[%c0_6, %c2, %c0_7], %4 {strides = array<i32>} : memref<8x21x21xf32, #tpu.memory_space<vmem>>, vector<8x16x2xf32>,
    %cst_8 = arith.constant 0.000000e+00 : f32
    %6 = vector.broadcast %cst_8 : f32 to vector<8x16x3xf32>
    %c0_9 = arith.constant 0 : index
    %c2_10 = arith.constant 2 : index
    %c18_11 = arith.constant 18 : index
    %7 = vector.load %arg2[%c0_9, %c2_10, %c18_11] : memref<8x21x21xf32, #tpu.memory_space<vmem>>, vector<8x16x3xf32>
    tpu.vector_store %arg2[%c0_9, %c2_10, %c18_11], %6 {strides = array<i32>} : memref<8x21x21xf32, #tpu.memory_space<vmem>>, vector<8x16x3xf32>,
    %c0_12 = arith.constant 0 : index
    %c0_13 = arith.constant 0 : index
    %c0_14 = arith.constant 0 : index
    %8 = vector.load %arg1[%c0_12, %c0_13, %c0_14] : memref<8x16x16xf32, #tpu.memory_space<vmem>>, vector<8x16x16xf32>
    %c0_15 = arith.constant 0 : index
    %c2_16 = arith.constant 2 : index
    %c2_17 = arith.constant 2 : index
    %9 = vector.load %arg2[%c0_15, %c2_16, %c2_17] : memref<8x21x21xf32, #tpu.memory_space<vmem>>, vector<8x16x16xf32>
    tpu.vector_store %arg2[%c0_15, %c2_16, %c2_17], %8 {strides = array<i32>} : memref<8x21x21xf32, #tpu.memory_space<vmem>>, vector<8x16x16xf32>,
    return
  }
  func.func @transform_0(%arg0: i32) -> (i32, i32, i32) {
    %c0_i32 = arith.constant 0 : i32
    %c0_i32_0 = arith.constant 0 : i32
    %c0_i32_1 = arith.constant 0 : i32
    return %arg0, %c0_i32, %c0_i32_0 : i32, i32, i32
  }
  func.func @transform_1(%arg0: i32) -> (i32, i32, i32) {
    %c0_i32 = arith.constant 0 : i32
    %c0_i32_0 = arith.constant 0 : i32
    %c0_i32_1 = arith.constant 0 : i32
    return %arg0, %c0_i32, %c0_i32_0 : i32, i32, i32
  }
}

</mosaic_0001>

<llo_original>
// kernel: tpu_custom_call.1
$region0: #{tpu_custom_call.1}
  #allocation0 [shape = 'u32[]', space=smem, size = 0x4, offset = 0x4, fixed_abs, tag = 'smem constant byte address 0x4 - core index']
  #allocation1 [shape = 'u32[144,128]{1,0:T(1,128)}', space=vmem, size = 0x12000, scoped, tag = 'internal scratch']
  %s0 = inlined_call_operand.hbm [shape: f32[8,16,16], index: 0, kind: input, shape index: {}]
  %s1 = inlined_call_operand.vmem [shape: f32[8,21,21], index: 1, kind: output, shape index: {}]
  %s2 = sld [smem:[#allocation0]]
  $region18: #{tpu_custom_call.1} parent=0
    _
  %s4 = ssub.s32 1, %s2
  %s5 = scalar_select 0, %s4, %s2
  $region1: #{tpu_custom_call.1} parent=0
    #allocation2 [shape = 'u8[65536]{0}', space=vmem, size = 0x10000, scoped, tag = 'input window, operand 0, single buffered']
    #allocation3 [shape = 's32[1]{0}', space=sflag, size = 0x4, scoped, tag = 'scoped memory for tpu_custom_call.1']
    %6 = vsyncpa [#allocation3], 0
    // Predicated region
    $region2: #{tpu_custom_call.1} parent=1 // pred_check
      _
    $region3: #{tpu_custom_call.1} parent=1 // pred_check_branch
      %8 = sbr.rel (0) target = $region5
    $region4: #{tpu_custom_call.1} parent=1 // pred_region
      %s10 = ssub.s32 2048, 2048
      %11 = vsyncadd [#allocation3], %s10
      %s12 = sshll.u32 [#allocation2], 4
      %s13 = int_to_ptr.vmem [resolvable:$true] %s12
      %18 = dma.hbm_to_vmem [thread:$0]  %s0, 2048, %s13, [#allocation3], 128, 128, 8
    $region5: #{tpu_custom_call.1} parent=1 // pred_fallthru
      _
    // Predicated region
    $region6: #{tpu_custom_call.1} parent=1 // pred_check
      _
    $region7: #{tpu_custom_call.1} parent=1 // pred_check_branch
      %20 = sbr.rel (0) target = $region9
    $region8: #{tpu_custom_call.1} parent=1 // pred_region
      %21 = dma.done [#allocation3], 2048
    $region9: #{tpu_custom_call.1} parent=1 // pred_fallthru
      _
    %vm22 = vcmask 164864
    %23 = vst.msk [vmem:[%s1] sm:$0x3] %vm22, 0.0
    %24 = vst.msk [vmem:[%s1 + $0x18] sm:$0x3] %vm22, 0.0
    %25 = vst.msk [vmem:[%s1 + $0x30] sm:$0x3] %vm22, 0.0
    %26 = vst.msk [vmem:[%s1 + $0x48] sm:$0x3] %vm22, 0.0
    %27 = vst.msk [vmem:[%s1 + $0x60] sm:$0x3] %vm22, 0.0
    %28 = vst.msk [vmem:[%s1 + $0x78] sm:$0x3] %vm22, 0.0
    %29 = vst.msk [vmem:[%s1 + $0x90] sm:$0x3] %vm22, 0.0
    %30 = vst.msk [vmem:[%s1 + $0xa8] sm:$0x3] %vm22, 0.0
    %vm31 = vcmask 165888
    %32 = vst.msk [vmem:[%s1 + $0x12] sm:$0x7] %vm31, 0.0
    %33 = vst.msk [vmem:[%s1 + $0x2a] sm:$0x7] %vm31, 0.0
    %34 = vst.msk [vmem:[%s1 + $0x42] sm:$0x7] %vm31, 0.0
    %35 = vst.msk [vmem:[%s1 + $0x5a] sm:$0x7] %vm31, 0.0
    %36 = vst.msk [vmem:[%s1 + $0x72] sm:$0x7] %vm31, 0.0
    %37 = vst.msk [vmem:[%s1 + $0x8a] sm:$0x7] %vm31, 0.0
    %38 = vst.msk [vmem:[%s1 + $0xa2] sm:$0x7] %vm31, 0.0
    %39 = vst.msk [vmem:[%s1 + $0xba] sm:$0x7] %vm31, 0.0
    %vm40 = vcmask 15360
    %41 = vst.msk [vmem:[%s1 + $0x2] sm:$0xff] %vm40, 0.0
    %42 = vst.msk [vmem:[%s1 + $0xa] sm:$0xff] %vm40, 0.0
    %43 = vst.msk [vmem:[%s1 + $0x1a] sm:$0xff] %vm40, 0.0
    %44 = vst.msk [vmem:[%s1 + $0x22] sm:$0xff] %vm40, 0.0
    %45 = vst.msk [vmem:[%s1 + $0x32] sm:$0xff] %vm40, 0.0
    %46 = vst.msk [vmem:[%s1 + $0x3a] sm:$0xff] %vm40, 0.0
    %47 = vst.msk [vmem:[%s1 + $0x4a] sm:$0xff] %vm40, 0.0
    %48 = vst.msk [vmem:[%s1 + $0x52] sm:$0xff] %vm40, 0.0
    %49 = vst.msk [vmem:[%s1 + $0x62] sm:$0xff] %vm40, 0.0
    %50 = vst.msk [vmem:[%s1 + $0x6a] sm:$0xff] %vm40, 0.0
    %51 = vst.msk [vmem:[%s1 + $0x7a] sm:$0xff] %vm40, 0.0
    %52 = vst.msk [vmem:[%s1 + $0x82] sm:$0xff] %vm40, 0.0
    %53 = vst.msk [vmem:[%s1 + $0x92] sm:$0xff] %vm40, 0.0
    %54 = vst.msk [vmem:[%s1 + $0x9a] sm:$0xff] %vm40, 0.0
    %55 = vst.msk [vmem:[%s1 + $0xaa] sm:$0xff] %vm40, 0.0
    %56 = vst.msk [vmem:[%s1 + $0xb2] sm:$0xff] %vm40, 0.0
    %vm57 = vcmask 171152
    %58 = vst.msk [vmem:[%s1 + $0x2] sm:$0xff] %vm57, 0.0
    %59 = vst.msk [vmem:[%s1 + $0xa] sm:$0xff] %vm57, 0.0
    %60 = vst.msk [vmem:[%s1 + $0x1a] sm:$0xff] %vm57, 0.0
    %61 = vst.msk [vmem:[%s1 + $0x22] sm:$0xff] %vm57, 0.0
    %62 = vst.msk [vmem:[%s1 + $0x32] sm:$0xff] %vm57, 0.0
    %63 = vst.msk [vmem:[%s1 + $0x3a] sm:$0xff] %vm57, 0.0
    %64 = vst.msk [vmem:[%s1 + $0x4a] sm:$0xff] %vm57, 0.0
    %65 = vst.msk [vmem:[%s1 + $0x52] sm:$0xff] %vm57, 0.0
    %66 = vst.msk [vmem:[%s1 + $0x62] sm:$0xff] %vm57, 0.0
    %67 = vst.msk [vmem:[%s1 + $0x6a] sm:$0xff] %vm57, 0.0
    %68 = vst.msk [vmem:[%s1 + $0x7a] sm:$0xff] %vm57, 0.0
    %69 = vst.msk [vmem:[%s1 + $0x82] sm:$0xff] %vm57, 0.0
    %70 = vst.msk [vmem:[%s1 + $0x92] sm:$0xff] %vm57, 0.0
    %71 = vst.msk [vmem:[%s1 + $0x9a] sm:$0xff] %vm57, 0.0
    %72 = vst.msk [vmem:[%s1 + $0xaa] sm:$0xff] %vm57, 0.0
    %73 = vst.msk [vmem:[%s1 + $0xb2] sm:$0xff] %vm57, 0.0
    %v74 = vld [vmem:[#allocation2] sm:$0xff]
    %v75 = vld [vmem:[#allocation2 + $0x8] sm:$0xff]
    %v76 = vld [vmem:[#allocation2 + $0x10] sm:$0xff]
    %v77 = vld [vmem:[#allocation2 + $0x18] sm:$0xff]
    %v78 = vld [vmem:[#allocation2 + $0x20] sm:$0xff]
    %v79 = vld [vmem:[#allocation2 + $0x28] sm:$0xff]
    %v80 = vld [vmem:[#allocation2 + $0x30] sm:$0xff]
    %v81 = vld [vmem:[#allocation2 + $0x38] sm:$0xff]
    %v82 = vld [vmem:[#allocation2 + $0x40] sm:$0xff]
    %v83 = vld [vmem:[#allocation2 + $0x48] sm:$0xff]
    %v84 = vld [vmem:[#allocation2 + $0x50] sm:$0xff]
    %v85 = vld [vmem:[#allocation2 + $0x58] sm:$0xff]
    %v86 = vld [vmem:[#allocation2 + $0x60] sm:$0xff]
    %v87 = vld [vmem:[#allocation2 + $0x68] sm:$0xff]
    %v88 = vld [vmem:[#allocation2 + $0x70] sm:$0xff]
    %v89 = vld [vmem:[#allocation2 + $0x78] sm:$0xff]
    %106 = vrot.lane.b32.xlu0 %v74, 2
    %v107 = vpop.permute.xlu0 %106
    %108 = vrot.lane.b32.xlu0 %v75, 2
    %v109 = vpop.permute.xlu0 %108
    %110 = vrot.lane.b32.xlu0 %v76, 2
    %v111 = vpop.permute.xlu0 %110
    %112 = vrot.lane.b32.xlu0 %v77, 2
    %v113 = vpop.permute.xlu0 %112
    %114 = vrot.lane.b32.xlu0 %v78, 2
    %v115 = vpop.permute.xlu0 %114
    %116 = vrot.lane.b32.xlu0 %v79, 2
    %v117 = vpop.permute.xlu0 %116
    %118 = vrot.lane.b32.xlu0 %v80, 2
    %v119 = vpop.permute.xlu0 %118
    %120 = vrot.lane.b32.xlu0 %v81, 2
    %v121 = vpop.permute.xlu0 %120
    %122 = vrot.lane.b32.xlu0 %v82, 2
    %v123 = vpop.permute.xlu0 %122
    %124 = vrot.lane.b32.xlu0 %v83, 2
    %v125 = vpop.permute.xlu0 %124
    %126 = vrot.lane.b32.xlu0 %v84, 2
    %v127 = vpop.permute.xlu0 %126
    %128 = vrot.lane.b32.xlu0 %v85, 2
    %v129 = vpop.permute.xlu0 %128
    %130 = vrot.lane.b32.xlu0 %v86, 2
    %v131 = vpop.permute.xlu0 %130
    %132 = vrot.lane.b32.xlu0 %v87, 2
    %v133 = vpop.permute.xlu0 %132
    %134 = vrot.lane.b32.xlu0 %v88, 2
    %v135 = vpop.permute.xlu0 %134
    %136 = vrot.lane.b32.xlu0 %v89, 2
    %v137 = vpop.permute.xlu0 %136
    %vm154 = vcmask 146448
    %155 = vst.msk [vmem:[%s1 + $0x2] sm:$0xff] %vm154, %v107
    %156 = vst.msk [vmem:[%s1 + $0xa] sm:$0xff] %vm154, %v109
    %157 = vst.msk [vmem:[%s1 + $0x1a] sm:$0xff] %vm154, %v111
    %158 = vst.msk [vmem:[%s1 + $0x22] sm:$0xff] %vm154, %v113
    %159 = vst.msk [vmem:[%s1 + $0x32] sm:$0xff] %vm154, %v115
    %160 = vst.msk [vmem:[%s1 + $0x3a] sm:$0xff] %vm154, %v117
    %161 = vst.msk [vmem:[%s1 + $0x4a] sm:$0xff] %vm154, %v119
    %162 = vst.msk [vmem:[%s1 + $0x52] sm:$0xff] %vm154, %v121
    %163 = vst.msk [vmem:[%s1 + $0x62] sm:$0xff] %vm154, %v123
    %164 = vst.msk [vmem:[%s1 + $0x6a] sm:$0xff] %vm154, %v125
    %165 = vst.msk [vmem:[%s1 + $0x7a] sm:$0xff] %vm154, %v127
    %166 = vst.msk [vmem:[%s1 + $0x82] sm:$0xff] %vm154, %v129
    %167 = vst.msk [vmem:[%s1 + $0x92] sm:$0xff] %vm154, %v131
    %168 = vst.msk [vmem:[%s1 + $0x9a] sm:$0xff] %vm154, %v133
    %169 = vst.msk [vmem:[%s1 + $0xaa] sm:$0xff] %vm154, %v135
    %170 = vst.msk [vmem:[%s1 + $0xb2] sm:$0xff] %vm154, %v137
    // Predicated region
    $region10: #{tpu_custom_call.1} parent=1 // pred_check
      _
    $region11: #{tpu_custom_call.1} parent=1 // pred_check_branch
      %172 = sbr.rel (0) target = $region13
    $region12: #{tpu_custom_call.1} parent=1 // pred_region
      _
    $region13: #{tpu_custom_call.1} parent=1 // pred_fallthru
      _
    // Predicated region
    $region14: #{tpu_custom_call.1} parent=1 // pred_check
      _
    $region15: #{tpu_custom_call.1} parent=1 // pred_check_branch
      %174 = sbr.rel (0) target = $region17
    $region16: #{tpu_custom_call.1} parent=1 // pred_region
      _
    $region17: #{tpu_custom_call.1} parent=1 // pred_fallthru
      _
    %175 = vsyncpa [#allocation3], 1

</llo_original>
